<compile_context>
chip_gen: v7x
topology: tpu7x:2x2x1
jax: 0.10.0
libtpu: 0.0.40
codegen_flags: <defaults>
</compile_context>

<pallas_src>
from functools import lru_cache

import numpy as np
import jax
import jax.numpy as jnp
from jax.experimental import pallas as pl
from jax.experimental.pallas import tpu as pltpu

SIGMA = 20
TRUNCATE = 4.0
LW = int(TRUNCATE * SIGMA + 0.5)     # 80 -> Gaussian filter length 2*80+1 = 161
PAD = SIGMA * int(TRUNCATE)          # 80 -> ReflectionPad1d amount

_LANE = 128
_VMEM_SLAB_TARGET = 32 << 20         # target per-step footprint when picking Bt
_VMEM_LIMIT_CAP = 48 << 20           # safe on v5e/v6e (128 MiB) and v7x (64 MiB)


def gaus_filter1d(sigma=SIGMA, truncate=TRUNCATE):
    """Same construction as AdaptiveAudioNormalization.get_gaus_filter1d."""
    sd = float(sigma)
    lw = int(truncate * sd + 0.5)
    sigma2 = sigma * sigma
    x = np.arange(-lw, lw + 1)
    phi = np.exp(-0.5 / sigma2 * x ** 2)
    phi = phi / phi.sum()
    return phi.astype(np.float64)    # (161,), f64 for exact host precompute


@lru_cache(maxsize=None)
def smoothing_weight_vector(T, T_pad, C):
    """Collapse ReflectionPad1d(80) + Gaussian conv1d + time-mean + channel-mean scale
    into one (1, T_pad) vector v such that
        mean_mean[b] = sum_t ( sum_c x[b, c, t] ) * v[t]
    All linear algebra is done once on host in float64; the 1/C and 1/T factors are
    folded in, and v is zero-extended from T to the lane-aligned T_pad.
    """
    phi = gaus_filter1d()                                  # (K,), K=161
    K = phi.shape[0]
    Tp = T + 2 * PAD
    # Column-sums of the Toeplitz conv matrix W[(Tp, T)] scaled by 1/T:
    #   w_sum[j] = (1/T) * sum_t W[j, t],  with W[t:t+K, t] = phi
    w_sum = np.zeros(Tp, dtype=np.float64)
    for k in range(K):
        w_sum[k:k + T] += phi[k]
    w_sum /= T
    # Reflection-pad index map (PyTorch ReflectionPad1d semantics, no edge repeat).
    idx = np.arange(T)
    refl = np.concatenate([idx[1:PAD + 1][::-1], idx, idx[T - 1 - PAD:T - 1][::-1]])
    assert refl.shape[0] == Tp
    v = np.zeros(T, dtype=np.float64)
    np.add.at(v, refl, w_sum)
    v /= C                                                  # fold the channel-mean 1/C
    v_padded = np.zeros(T_pad, dtype=np.float32)
    v_padded[:T] = v.astype(np.float32)
    return jnp.asarray(v_padded).reshape(1, T_pad)


def _adaptive_norm_kernel(spect_ref, v_ref, out_ref):
    # spect_ref: (Bt, C, T_pad) slab; v_ref: (1, T_pad) grid-invariant weights.
    # Compute in f32 regardless of input dtype (bf16 inputs keep f32 internal math).
    x = jnp.log1p(spect_ref[...].astype(jnp.float32) * 1048576.0)   # EUP/VPU
    ch_sum = jnp.sum(x, axis=1)                                      # (Bt, T_pad), XLU
    mean_mean = jnp.sum(ch_sum * v_ref[...], axis=-1)                # (Bt,)  pad+conv+means collapsed
    out_ref[...] = (x - mean_mean[:, None, None]).astype(out_ref.dtype)


def adaptive_audio_normalization(spect):
    B, C, T = spect.shape
    assert T > PAD, "ReflectionPad1d requires T > pad (same constraint as PyTorch)"

    # Lane-align T so output stores are unmasked vst and DMAs are tile-aligned.
    T_pad = ((T + _LANE - 1) // _LANE) * _LANE
    v = smoothing_weight_vector(T, T_pad, C)                         # (1, T_pad), cached
    spect_p = spect if T_pad == T else jnp.pad(
        spect, ((0, 0), (0, 0), (0, T_pad - T)))                     # zeros -> log1p=0, v=0 there

    # Per-grid-step VMEM footprint: double-buffered input + output slabs plus the
    # materialized f32 x temporary (used by both the reduce and the subtract).
    itemsize = spect.dtype.itemsize
    def step_bytes(bt):
        slab = bt * C * T_pad
        return slab * itemsize * 2 + slab * itemsize * 2 + slab * 4

    bt = 1
    for cand in range(B, 0, -1):
        if B % cand == 0 and step_bytes(cand) <= _VMEM_SLAB_TARGET:
            bt = cand
            break
    vmem_limit = int(min(max(step_bytes(bt) + (4 << 20), 16 << 20), _VMEM_LIMIT_CAP))
    # TODO(synk): if even a single-batch slab exceeds the VMEM cap (very long C*T,
    # especially on v7x's 64 MiB VMEM), switch to a two-pass T-tiled kernel
    # (tiled reduction for mean_mean, then tiled subtract) or an inner
    # pltpu.emit_pipeline over T-chunks to hide DMA when B is 1-2.

    out = pl.pallas_call(
        _adaptive_norm_kernel,
        out_shape=jax.ShapeDtypeStruct((B, C, T_pad), spect.dtype),
        grid_spec=pltpu.PrefetchScalarGridSpec(
            num_scalar_prefetch=0,
            grid=(B // bt,),
            in_specs=[
                pl.BlockSpec((bt, C, T_pad), lambda b: (b, 0, 0)),   # batch-tiled slab
                pl.BlockSpec((1, T_pad), lambda b: (0, 0)),          # grid-invariant weights (no re-DMA)
            ],
            out_specs=pl.BlockSpec((bt, C, T_pad), lambda b: (b, 0, 0)),
        ),
        compiler_params=pltpu.CompilerParams(
            dimension_semantics=("parallel",),                       # batch tiles shard across TCs
            vmem_limit_bytes=vmem_limit,
        ),
    )(spect_p, v)

    if T_pad != T:
        out = out[:, :, :T]
    return out


def reference_numpy(spect):
    """Pure-numpy (float64) re-implementation of the PyTorch forward."""
    x = np.log1p(spect.astype(np.float64) * 1048576.0)
    m = x.mean(axis=1)                                               # (B, T)
    mp = np.pad(m, ((0, 0), (PAD, PAD)), mode="reflect")
    phi = gaus_filter1d()
    conv = np.stack([np.correlate(mp[b], phi, mode="valid")          # cross-correlation == F.conv1d
                     for b in range(spect.shape[0])])                # (B, T)
    mean_mean = conv.mean(axis=-1)[:, None, None]                    # (B, 1, 1)
    return x - mean_mean


if __name__ == "__main__":
    key = jax.random.PRNGKey(0)
    # T=100 > PAD=80 and deliberately NOT a multiple of 128 to exercise the
    # lane-padding path; B=4 exercises the batch-tiled grid.
    B, C, T = 4, 8, 100
    spect = jax.random.uniform(key, (B, C, T), dtype=jnp.float32)

    out = adaptive_audio_normalization(spect)
    out = jax.block_until_ready(out)

    ref = reference_numpy(np.asarray(spect))
    np.testing.assert_allclose(np.asarray(out), ref, rtol=1e-3, atol=1e-3)
    print("KERNEL_OK")
</pallas_src>

<mosaic_0001>
module attributes {stable_mosaic.version = 11 : i64} {
  func.func @_adaptive_norm_kernel(%arg0: i32, %arg1: memref<4x8x128xf32, #tpu.memory_space<vmem>>, %arg2: memref<1x128xf32, #tpu.memory_space<vmem>>, %arg3: memref<4x8x128xf32, #tpu.memory_space<vmem>>) attributes {dimension_semantics = [#tpu.dimension_semantics<parallel>], iteration_bounds = array<i64: 1>, scalar_prefetch = 0 : i64, scratch_operands = 0 : i64, tpu.core_type = #tpu.core_type<tc>, window_params = [{transform_indices = @transform_0, window_bounds = array<i64: 4, 8, 128>}, {pipeline_mode = #tpu.pipeline_mode<synchronous>, transform_indices = @transform_1, window_bounds = array<i64: 1, 128>}, {transform_indices = @transform_2, window_bounds = array<i64: 4, 8, 128>}]} {
    %c0 = arith.constant 0 : index
    %c0_0 = arith.constant 0 : index
    %c0_1 = arith.constant 0 : index
    %0 = vector.load %arg1[%c0, %c0_0, %c0_1] : memref<4x8x128xf32, #tpu.memory_space<vmem>>, vector<4x8x128xf32>
    %cst = arith.constant 0x49800000 : f32
    %1 = vector.broadcast %cst : f32 to vector<4x8x128xf32>
    %2 = arith.mulf %0, %1 : vector<4x8x128xf32>
    %3 = math.log1p %2 : vector<4x8x128xf32>
    %cst_2 = arith.constant dense<0.000000e+00> : vector<4x128xf32>
    %4 = vector.multi_reduction <add>, %3, %cst_2 [1] : vector<4x8x128xf32> to vector<4x128xf32>
    %c0_3 = arith.constant 0 : index
    %c0_4 = arith.constant 0 : index
    %5 = vector.load %arg2[%c0_3, %c0_4] : memref<1x128xf32, #tpu.memory_space<vmem>>, vector<1x128xf32>
    %6 = vector.broadcast %5 : vector<1x128xf32> to vector<4x128xf32>
    %7 = arith.mulf %4, %6 : vector<4x128xf32>
    %cst_5 = arith.constant dense<0.000000e+00> : vector<4xf32>
    %8 = vector.multi_reduction <add>, %7, %cst_5 [1] : vector<4x128xf32> to vector<4xf32>
    %9 = vector.shape_cast %8 : vector<4xf32> to vector<4x1x1xf32>
    %10 = vector.broadcast %9 : vector<4x1x1xf32> to vector<4x8x128xf32>
    %11 = arith.subf %3, %10 : vector<4x8x128xf32>
    %c0_6 = arith.constant 0 : index
    %c0_7 = arith.constant 0 : index
    %c0_8 = arith.constant 0 : index
    %12 = vector.load %arg3[%c0_6, %c0_7, %c0_8] : memref<4x8x128xf32, #tpu.memory_space<vmem>>, vector<4x8x128xf32>
    tpu.vector_store %arg3[%c0_6, %c0_7, %c0_8], %11 {strides = array<i32>} : memref<4x8x128xf32, #tpu.memory_space<vmem>>, vector<4x8x128xf32>,
    return
  }
  func.func @transform_0(%arg0: i32) -> (i32, i32, i32) {
    %c0_i32 = arith.constant 0 : i32
    %c0_i32_0 = arith.constant 0 : i32
    %c0_i32_1 = arith.constant 0 : i32
    return %arg0, %c0_i32, %c0_i32_0 : i32, i32, i32
  }
  func.func @transform_1(%arg0: i32) -> (i32, i32) {
    %c0_i32 = arith.constant 0 : i32
    %c0_i32_0 = arith.constant 0 : i32
    %c0_i32_1 = arith.constant 0 : i32
    return %c0_i32, %c0_i32_0 : i32, i32
  }
  func.func @transform_2(%arg0: i32) -> (i32, i32, i32) {
    %c0_i32 = arith.constant 0 : i32
    %c0_i32_0 = arith.constant 0 : i32
    %c0_i32_1 = arith.constant 0 : i32
    return %arg0, %c0_i32, %c0_i32_0 : i32, i32, i32
  }
}

</mosaic_0001>

<llo_original>
// kernel: tpu_custom_call.1
$region0: #{tpu_custom_call.1}
  #allocation0 [shape = 'u32[]', space=smem, size = 0x4, offset = 0x4, fixed_abs, tag = 'smem constant byte address 0x4 - core index']
  #allocation1 [shape = 'u32[144,128]{1,0:T(1,128)}', space=vmem, size = 0x12000, scoped, tag = 'internal scratch']
  %s0 = inlined_call_operand.hbm [shape: f32[4,8,128], index: 0, kind: input, shape index: {}]
  %s1 = inlined_call_operand.vmem [shape: f32[1,128], index: 1, kind: input, shape index: {}]
  %s2 = inlined_call_operand.hbm [shape: f32[4,8,128], index: 2, kind: output, shape index: {}]
  %s3 = sld [smem:[#allocation0]]
  $region22: #{tpu_custom_call.1} parent=0
    _
  %s5 = ssub.s32 1, %s3
  %s6 = scalar_select 0, %s5, %s3
  $region1: #{tpu_custom_call.1} parent=0
    #allocation2 [shape = 'u8[16384]{0}', space=vmem, size = 0x4000, scoped, tag = 'input window, operand 0, single buffered']
    #allocation3 [shape = 's32[1]{0}', space=sflag, size = 0x4, scoped, tag = 'scoped memory for tpu_custom_call.1']
    #allocation4 [shape = 's32[1]{0}', space=sflag, size = 0x4, scoped, tag = 'scoped memory for tpu_custom_call.1']
    #allocation5 [shape = 'u8[16384]{0}', space=vmem, size = 0x4000, scoped, tag = 'output window, operand 0, single buffered']
    %7 = vsyncpa [#allocation3], 0
    %8 = vsyncpa [#allocation4], 0
    // Predicated region
    $region2: #{tpu_custom_call.1} parent=1 // pred_check
      _
    $region3: #{tpu_custom_call.1} parent=1 // pred_check_branch
      %10 = sbr.rel (0) target = $region5
    $region4: #{tpu_custom_call.1} parent=1 // pred_region
      %s12 = ssub.s32 512, 512
      %13 = vsyncadd [#allocation3], %s12
      %s14 = sshll.u32 [#allocation2], 4
      %s15 = int_to_ptr.vmem [resolvable:$true] %s14
      %20 = dma.hbm_to_vmem [thread:$0]  %s0, 512, %s15, [#allocation3], 128, 128, 8
    $region5: #{tpu_custom_call.1} parent=1 // pred_fallthru
      _
    // Predicated region
    $region6: #{tpu_custom_call.1} parent=1 // pred_check
      _
    $region7: #{tpu_custom_call.1} parent=1 // pred_check_branch
      %22 = sbr.rel (0) target = $region9
    $region8: #{tpu_custom_call.1} parent=1 // pred_region
      _
    $region9: #{tpu_custom_call.1} parent=1 // pred_fallthru
      _
    // Predicated region
    $region10: #{tpu_custom_call.1} parent=1 // pred_check
      _
    $region11: #{tpu_custom_call.1} parent=1 // pred_check_branch
      %24 = sbr.rel (0) target = $region13
    $region12: #{tpu_custom_call.1} parent=1 // pred_region
      %25 = dma.done [#allocation3], 512
    $region13: #{tpu_custom_call.1} parent=1 // pred_fallthru
      _
    %v26 = vld [vmem:[#allocation2] sm:$0xff]
    %v27 = vld [vmem:[#allocation2 + $0x8] sm:$0xff]
    %v28 = vld [vmem:[#allocation2 + $0x10] sm:$0xff]
    %v29 = vld [vmem:[#allocation2 + $0x18] sm:$0xff]
    %v30 = vmul.f32 %v26, 1048576.0
    %v31 = vmul.f32 %v27, 1048576.0
    %v32 = vmul.f32 %v28, 1048576.0
    %v33 = vmul.f32 %v29, 1048576.0
    %v34 = vadd.f32 %v30, 1.0
    %v35 = vlog2.pop %v34
    %v36 = vmul.f32 %v35, 0.6931472
    %v37 = vmul.f32 -0.5, %v30
    %v38 = vadd.f32 %v37, 1.0
    %v39 = vmul.f32 %v38, %v30
    %v40 = vand.u32 2147483647, %v30
    %vm41 = vcmp.lt.f32.partialorder %v40, 0.0004427343
    %v42 = vsel %vm41, %v39, %v36
    %v43 = vadd.f32 %v31, 1.0
    %v44 = vlog2.pop %v43
    %v45 = vmul.f32 %v44, 0.6931472
    %v46 = vmul.f32 -0.5, %v31
    %v47 = vadd.f32 %v46, 1.0
    %v48 = vmul.f32 %v47, %v31
    %v49 = vand.u32 2147483647, %v31
    %vm50 = vcmp.lt.f32.partialorder %v49, 0.0004427343
    %v51 = vsel %vm50, %v48, %v45
    %v52 = vadd.f32 %v32, 1.0
    %v53 = vlog2.pop %v52
    %v54 = vmul.f32 %v53, 0.6931472
    %v55 = vmul.f32 -0.5, %v32
    %v56 = vadd.f32 %v55, 1.0
    %v57 = vmul.f32 %v56, %v32
    %v58 = vand.u32 2147483647, %v32
    %vm59 = vcmp.lt.f32.partialorder %v58, 0.0004427343
    %v60 = vsel %vm59, %v57, %v54
    %v61 = vadd.f32 %v33, 1.0
    %v62 = vlog2.pop %v61
    %v63 = vmul.f32 %v62, 0.6931472
    %v64 = vmul.f32 -0.5, %v33
    %v65 = vadd.f32 %v64, 1.0
    %v66 = vmul.f32 %v65, %v33
    %v67 = vand.u32 2147483647, %v33
    %vm68 = vcmp.lt.f32.partialorder %v67, 0.0004427343
    %v69 = vsel %vm68, %v66, %v63
    %v70 = vrot.slane %v42, 4
    %v71 = vadd.f32 %v42, %v70
    %v72 = vrot.slane %v71, 2
    %v73 = vadd.f32 %v71, %v72
    %v74 = vrot.slane %v73, 1
    %v75 = vadd.f32 %v73, %v74
    %v76 = vrot.slane %v51, 4
    %v77 = vadd.f32 %v51, %v76
    %v78 = vrot.slane %v77, 2
    %v79 = vadd.f32 %v77, %v78
    %v80 = vrot.slane %v79, 1
    %v81 = vadd.f32 %v79, %v80
    %v82 = vrot.slane %v60, 4
    %v83 = vadd.f32 %v60, %v82
    %v84 = vrot.slane %v83, 2
    %v85 = vadd.f32 %v83, %v84
    %v86 = vrot.slane %v85, 1
    %v87 = vadd.f32 %v85, %v86
    %v88 = vrot.slane %v69, 4
    %v89 = vadd.f32 %v69, %v88
    %v90 = vrot.slane %v89, 2
    %v91 = vadd.f32 %v89, %v90
    %v92 = vrot.slane %v91, 1
    %v93 = vadd.f32 %v91, %v92
    %v94 = vld [vmem:[%s1] sm:$0x1]
    %v96 = vlaneseq
    %v97 = vshrl.u32 %v96, 7
    %v98 = vsub.s32 0, %v97
    %v99 = vrot.slane %v94, %v98
    %v101 = vmul.f32 %v75, %v99
    %v102 = vmul.f32 %v81, %v99
    %v103 = vmul.f32 %v87, %v99
    %v104 = vmul.f32 %v93, %v99
    %v109 = vrot.slane %v102, 7
    %vm110 = vcmask 1041409
    %v111 = vsel %vm110, %v109, %v101
    %v112 = vrot.slane %v103, 6
    %vm113 = vcmask 1042434
    %v114 = vsel %vm113, %v112, %v111
    %v115 = vrot.slane %v104, 5
    %vm116 = vcmask 1043459
    %v117 = vsel %vm116, %v115, %v114
    %vm119 = vcmask 1043456
    %v120 = vsel %vm119, %v117, 0.0
    %121 = vadd.xlane.f32.xlu0 %v120
    %v122 = vpop.xlane.xlu0 %121
    %v124 = vlaneseq
    %v125 = vshrl.u32 %v124, 7
    %v126 = vsub.s32 0, %v125
    %v127 = vrot.slane %v122, %v126
    %v128 = vlaneseq
    %v129 = vshrl.u32 %v128, 7
    %v130 = vsub.s32 1, %v129
    %v131 = vrot.slane %v122, %v130
    %v132 = vlaneseq
    %v133 = vshrl.u32 %v132, 7
    %v134 = vsub.s32 2, %v133
    %v135 = vrot.slane %v122, %v134
    %v136 = vlaneseq
    %v137 = vshrl.u32 %v136, 7
    %v138 = vsub.s32 3, %v137
    %v139 = vrot.slane %v122, %v138
    %v144 = vsub.f32 %v42, %v127
    %v145 = vsub.f32 %v51, %v131
    %v146 = vsub.f32 %v60, %v135
    %v147 = vsub.f32 %v69, %v139
    %148 = vst [vmem:[#allocation5] sm:$0xff] %v144
    %149 = vst [vmem:[#allocation5 + $0x8] sm:$0xff] %v145
    %150 = vst [vmem:[#allocation5 + $0x10] sm:$0xff] %v146
    %151 = vst [vmem:[#allocation5 + $0x18] sm:$0xff] %v147
    // Predicated region
    $region14: #{tpu_custom_call.1} parent=1 // pred_check
      _
    $region15: #{tpu_custom_call.1} parent=1 // pred_check_branch
      %153 = sbr.rel (0) target = $region17
    $region16: #{tpu_custom_call.1} parent=1 // pred_region
      %s155 = ssub.s32 512, 512
      %156 = vsyncadd [#allocation4], %s155
      %s157 = sshll.u32 [#allocation5], 4
      %s158 = int_to_ptr.vmem [resolvable:$true] %s157
      %163 = dma.vmem_to_hbm [thread:$0]  %s158, 512, %s2, [#allocation4], 128, 128, 8
    $region17: #{tpu_custom_call.1} parent=1 // pred_fallthru
      _
    // Predicated region
    $region18: #{tpu_custom_call.1} parent=1 // pred_check
      _
    $region19: #{tpu_custom_call.1} parent=1 // pred_check_branch
      %165 = sbr.rel (0) target = $region21
    $region20: #{tpu_custom_call.1} parent=1 // pred_region
      %166 = dma.done [#allocation4], 512
    $region21: #{tpu_custom_call.1} parent=1 // pred_fallthru
      _
    %167 = vsyncpa [#allocation3], 1
    %168 = vsyncpa [#allocation4], 1

</llo_original>
